<compile_context>
chip_gen: v5e
topology: v5e:2x2
jax: 0.10.0
libtpu: 0.0.40
codegen_flags: <defaults>
</compile_context>

<pallas_src>
import jax
import jax.numpy as jnp
from jax.experimental import pallas as pl
from jax.experimental.pallas import tpu as pltpu


def _conv1d_out_len(L, k, s, p):
    return (L + 2 * p - k) // s + 1


def mycnn_forward(x, params):
    """x: (N, 1, L) float32 (PyTorch NCL). Returns (N, 1) float32."""
    N, Cin, L = x.shape
    assert Cin == 1
    K1, S1, P1 = 20, 10, 4
    K2, S2, P2 = 20, 10, 4
    C1, C2 = 8, 16
    assert K2 % S2 == 0  # conv2 im2col uses the block-window trick below

    L1 = _conv1d_out_len(L, K1, S1, P1)       # conv1 output length
    Lp1 = L1 // 2                             # AvgPool1d(2, 2) output length
    L2 = _conv1d_out_len(Lp1, K2, S2, P2)     # conv2 output length
    assert L2 >= 1, "input too short for this network"

    # conv2 im2col geometry (all static): output window t covers
    # hp_pad[S2*t : S2*t + K2] of the zero-padded pooled activation.
    pad_len = S2 * (L2 - 1) + K2              # padded length (multiple of S2)
    n_blk = pad_len // S2                     # = L2 + K2//S2 - 1
    need = pad_len - P2                       # rows of (hp ++ back zeros) used
    back = max(0, need - Lp1)                 # trailing zero rows

    # ---------------- plain-JAX glue: conv1 im2col + weight layout -----------
    x_pad = jnp.pad(x[:, 0, :], ((0, 0), (P1, P1)))                   # (N, L+2P)
    gidx = S1 * jnp.arange(L1)[:, None] + jnp.arange(K1)[None, :]
    patches1 = x_pad[:, gidx].reshape(N * L1, K1)                     # (N*L1, K1)

    w1m = jnp.transpose(params["conv1_w"][:, 0, :])                   # (K1, C1)
    b1m = params["conv1_b"].reshape(1, C1)
    w2m = jnp.transpose(params["conv2_w"], (2, 1, 0)).reshape(K2 * C1, C2)
    b2m = params["conv2_b"].reshape(1, C2)
    # TODO(synk): nn.Linear(32, 1) is shape-incompatible with the 16-channel
    # pooled output of the original forward (PyTorch would raise a matmul shape
    # error). We apply only the first 16 columns of the declared weight, which
    # is identical to zero-padding the 16 features to 32.
    fcwm = jnp.transpose(params["fc_w"])[:C2]                         # (C2, 1)
    fcbm = params["fc_b"].reshape(1, 1)

    # ---------------- Pallas kernel: all of the compute ----------------------
    def kernel(p1_ref, w1_ref, b1_ref, w2_ref, b2_ref, fcw_ref, fcb_ref, o_ref):
        # conv1 + bias + ReLU: one (N*L1, K1) x (K1, C1) MXU matmul.
        h1 = jnp.dot(p1_ref[...], w1_ref[...],
                     preferred_element_type=jnp.float32) + b1_ref[...]
        h1 = jnp.maximum(h1, 0.0).reshape(N, L1, C1)

        # AvgPool1d(kernel=2, stride=2): vectorized pair average (drops odd tail).
        h1e = h1[:, : 2 * Lp1, :].reshape(N, Lp1, 2, C1)
        hp = 0.5 * (h1e[:, :, 0, :] + h1e[:, :, 1, :])                # (N, Lp1, C1)

        # conv2 im2col: zero-pad along length, view as S2-sized blocks and
        # concatenate K2//S2 shifted block windows -> (N, L2, K2*C1).
        parts = [jnp.zeros((N, P2, C1), jnp.float32)]
        if need <= Lp1:
            parts.append(hp[:, :need, :])
        else:
            parts.append(hp)
            parts.append(jnp.zeros((N, back, C1), jnp.float32))
        hp_pad = jnp.concatenate(parts, axis=1)                       # (N, pad_len, C1)
        blocks = hp_pad.reshape(N, n_blk, S2, C1)
        pieces = [blocks[:, m:m + L2].reshape(N, L2, S2 * C1)
                  for m in range(K2 // S2)]                           # tap-major
        pat = jnp.concatenate(pieces, axis=-1).reshape(N * L2, K2 * C1)

        # conv2 + bias + ReLU: one MXU matmul with K = K2*C1 = 160.
        h2 = jnp.dot(pat, w2_ref[...],
                     preferred_element_type=jnp.float32) + b2_ref[...]
        h2 = jnp.maximum(h2, 0.0).reshape(N, L2, C2)

        # AdaptiveAvgPool1d(1): one reduction over the L2 positions.
        g = jnp.mean(h2, axis=1)                                      # (N, C2)

        # fc on the 16 real features (weight pre-sliced; no zero-pad concat).
        o_ref[...] = (jnp.dot(g, fcw_ref[...],
                              preferred_element_type=jnp.float32) + fcb_ref[...])

    # Everything is tiny (a few hundred KiB total), so a single grid-less call
    # with all operands VMEM-resident is the right shape here. For much larger
    # N / L, add a grid over batch (dimension_semantics=("parallel",)) with
    # BlockSpec tiling of patches1 so HBM<->VMEM transfers pipeline.
    vmem = pl.BlockSpec(memory_space=pltpu.MemorySpace.VMEM)
    return pl.pallas_call(
        kernel,
        out_shape=jax.ShapeDtypeStruct((N, 1), jnp.float32),
        in_specs=[vmem] * 7,
        out_specs=vmem,
    )(patches1, w1m, b1m, w2m, b2m, fcwm, fcbm)


# ---------------- pure-JAX reference (for correctness check) ----------------
def mycnn_reference(x, params):
    def conv1d(xin, w, b, s, p):
        Cout, Cin, K = w.shape
        Lin = xin.shape[2]
        xp = jnp.pad(xin, ((0, 0), (0, 0), (p, p)))
        Lout = (Lin + 2 * p - K) // s + 1
        idx = s * jnp.arange(Lout)[:, None] + jnp.arange(K)[None, :]
        patches = xp[:, :, idx]                                  # (N, Cin, Lout, K)
        return jnp.einsum("nclk,ock->nol", patches, w) + b[None, :, None]

    N = x.shape[0]
    h = jax.nn.relu(conv1d(x, params["conv1_w"], params["conv1_b"], 10, 4))
    Lh = h.shape[2] // 2
    h = h[:, :, : 2 * Lh].reshape(N, 8, Lh, 2).mean(-1)          # AvgPool1d(2,2)
    h = jax.nn.relu(conv1d(h, params["conv2_w"], params["conv2_b"], 10, 4))
    g = h.mean(-1)                                               # AdaptiveAvgPool1d(1)
    g32 = jnp.concatenate([g, jnp.zeros((N, 16), jnp.float32)], axis=1)
    return g32 @ params["fc_w"].T + params["fc_b"][None, :]


def init_params(key):
    ks = jax.random.split(key, 6)

    def u(k, shape, fan_in):
        bound = 1.0 / (fan_in ** 0.5)
        return jax.random.uniform(k, shape, jnp.float32, -bound, bound)

    return {
        "conv1_w": u(ks[0], (8, 1, 20), 1 * 20),
        "conv1_b": u(ks[1], (8,), 1 * 20),
        "conv2_w": u(ks[2], (16, 8, 20), 8 * 20),
        "conv2_b": u(ks[3], (16,), 8 * 20),
        "fc_w": u(ks[4], (1, 32), 32),
        "fc_b": u(ks[5], (1,), 32),
    }


if __name__ == "__main__":
    key = jax.random.PRNGKey(0)
    pkey, xkey = jax.random.split(key)
    params = init_params(pkey)

    # small 1-D signal: batch=2, in_channels=1, length=512  (NCL, like PyTorch)
    x = jax.random.normal(xkey, (2, 1, 512), jnp.float32)

    out = mycnn_forward(x, params)
    jax.block_until_ready(out)

    ref = mycnn_reference(x, params)
    assert out.shape == (2, 1)
    assert jnp.allclose(out, ref, atol=1e-4, rtol=1e-4)
    print("KERNEL_OK")
</pallas_src>

<mosaic_0001>
module attributes {stable_mosaic.version = 11 : i64} {
  func.func @kernel(%arg0: memref<102x20xf32, #tpu.memory_space<vmem>>, %arg1: memref<20x8xf32, #tpu.memory_space<vmem>>, %arg2: memref<1x8xf32, #tpu.memory_space<vmem>>, %arg3: memref<160x16xf32, #tpu.memory_space<vmem>>, %arg4: memref<1x16xf32, #tpu.memory_space<vmem>>, %arg5: memref<16x1xf32, #tpu.memory_space<vmem>>, %arg6: memref<1x1xf32, #tpu.memory_space<vmem>>, %arg7: memref<2x1xf32, #tpu.memory_space<vmem>>) attributes {dimension_semantics = [], scalar_prefetch = 0 : i64, scratch_operands = 0 : i64, tpu.core_type = #tpu.core_type<tc>} {
    %c0 = arith.constant 0 : index
    %c0_0 = arith.constant 0 : index
    %0 = vector.load %arg0[%c0, %c0_0] : memref<102x20xf32, #tpu.memory_space<vmem>>, vector<102x20xf32>
    %c0_1 = arith.constant 0 : index
    %c0_2 = arith.constant 0 : index
    %1 = vector.load %arg1[%c0_1, %c0_2] : memref<20x8xf32, #tpu.memory_space<vmem>>, vector<20x8xf32>
    %cst = arith.constant dense<0.000000e+00> : vector<102x8xf32>
    %2 = tpu.matmul %0, %1, %cst {dimension_numbers = #tpu.dot_dimension_numbers<[1], [0], [0], [1], [0, 0, 1, 1], [], []>} : vector<102x20xf32>, vector<20x8xf32>, vector<102x8xf32> -> vector<102x8xf32>
    %c0_3 = arith.constant 0 : index
    %c0_4 = arith.constant 0 : index
    %3 = vector.load %arg2[%c0_3, %c0_4] : memref<1x8xf32, #tpu.memory_space<vmem>>, vector<1x8xf32>
    %4 = vector.broadcast %3 : vector<1x8xf32> to vector<102x8xf32>
    %5 = arith.addf %2, %4 : vector<102x8xf32>
    %cst_5 = arith.constant 0.000000e+00 : f32
    %6 = vector.broadcast %cst_5 : f32 to vector<102x8xf32>
    %7 = arith.maximumf %5, %6 : vector<102x8xf32>
    %8 = vector.shape_cast %7 : vector<102x8xf32> to vector<2x51x8xf32>
    %9 = vector.extract_strided_slice %8 {offsets = [0, 0, 0], sizes = [2, 50, 8], strides = [1, 1, 1]} : vector<2x51x8xf32> to vector<2x50x8xf32>
    %10 = vector.shape_cast %9 : vector<2x50x8xf32> to vector<2x25x2x8xf32>
    %11 = vector.extract_strided_slice %10 {offsets = [0, 0, 0, 0], sizes = [2, 25, 1, 8], strides = [1, 1, 1, 1]} : vector<2x25x2x8xf32> to vector<2x25x1x8xf32>
    %12 = vector.shape_cast %11 : vector<2x25x1x8xf32> to vector<2x25x8xf32>
    %13 = vector.extract_strided_slice %10 {offsets = [0, 0, 1, 0], sizes = [2, 25, 1, 8], strides = [1, 1, 1, 1]} : vector<2x25x2x8xf32> to vector<2x25x1x8xf32>
    %14 = vector.shape_cast %13 : vector<2x25x1x8xf32> to vector<2x25x8xf32>
    %15 = arith.addf %12, %14 : vector<2x25x8xf32>
    %cst_6 = arith.constant 5.000000e-01 : f32
    %16 = vector.broadcast %cst_6 : f32 to vector<2x25x8xf32>
    %17 = arith.mulf %16, %15 : vector<2x25x8xf32>
    %cst_7 = arith.constant 0.000000e+00 : f32
    %18 = vector.broadcast %cst_7 : f32 to vector<2x4x8xf32>
    %cst_8 = arith.constant 0.000000e+00 : f32
    %19 = vector.broadcast %cst_8 : f32 to vector<2x1x8xf32>
    %20 = tpu.concatenate %18, %17, %19 in 1 : vector<2x4x8xf32>, vector<2x25x8xf32>, vector<2x1x8xf32> -> vector<2x30x8xf32>
    %21 = vector.shape_cast %20 : vector<2x30x8xf32> to vector<2x3x10x8xf32>
    %22 = vector.extract_strided_slice %21 {offsets = [0, 0, 0, 0], sizes = [2, 2, 10, 8], strides = [1, 1, 1, 1]} : vector<2x3x10x8xf32> to vector<2x2x10x8xf32>
    %23 = vector.shape_cast %22 : vector<2x2x10x8xf32> to vector<2x2x80xf32>
    %24 = vector.extract_strided_slice %21 {offsets = [0, 1, 0, 0], sizes = [2, 2, 10, 8], strides = [1, 1, 1, 1]} : vector<2x3x10x8xf32> to vector<2x2x10x8xf32>
    %25 = vector.shape_cast %24 : vector<2x2x10x8xf32> to vector<2x2x80xf32>
    %26 = tpu.concatenate %23, %25 in 2 : vector<2x2x80xf32>, vector<2x2x80xf32> -> vector<2x2x160xf32>
    %27 = vector.shape_cast %26 : vector<2x2x160xf32> to vector<4x160xf32>
    %c0_9 = arith.constant 0 : index
    %c0_10 = arith.constant 0 : index
    %28 = vector.load %arg3[%c0_9, %c0_10] : memref<160x16xf32, #tpu.memory_space<vmem>>, vector<160x16xf32>
    %cst_11 = arith.constant dense<0.000000e+00> : vector<4x16xf32>
    %29 = tpu.matmul %27, %28, %cst_11 {dimension_numbers = #tpu.dot_dimension_numbers<[1], [0], [0], [1], [0, 0, 1, 1], [], []>} : vector<4x160xf32>, vector<160x16xf32>, vector<4x16xf32> -> vector<4x16xf32>
    %c0_12 = arith.constant 0 : index
    %c0_13 = arith.constant 0 : index
    %30 = vector.load %arg4[%c0_12, %c0_13] : memref<1x16xf32, #tpu.memory_space<vmem>>, vector<1x16xf32>
    %31 = vector.broadcast %30 : vector<1x16xf32> to vector<4x16xf32>
    %32 = arith.addf %29, %31 : vector<4x16xf32>
    %cst_14 = arith.constant 0.000000e+00 : f32
    %33 = vector.broadcast %cst_14 : f32 to vector<4x16xf32>
    %34 = arith.maximumf %32, %33 : vector<4x16xf32>
    %35 = vector.shape_cast %34 : vector<4x16xf32> to vector<2x2x16xf32>
    %cst_15 = arith.constant dense<0.000000e+00> : vector<2x16xf32>
    %36 = vector.multi_reduction <add>, %35, %cst_15 [1] : vector<2x2x16xf32> to vector<2x16xf32>
    %cst_16 = arith.constant 2.000000e+00 : f32
    %37 = vector.broadcast %cst_16 : f32 to vector<2x16xf32>
    %38 = arith.divf %36, %37 : vector<2x16xf32>
    %c0_17 = arith.constant 0 : index
    %c0_18 = arith.constant 0 : index
    %39 = vector.load %arg5[%c0_17, %c0_18] : memref<16x1xf32, #tpu.memory_space<vmem>>, vector<16x1xf32>
    %cst_19 = arith.constant dense<0.000000e+00> : vector<2x1xf32>
    %40 = tpu.matmul %38, %39, %cst_19 {dimension_numbers = #tpu.dot_dimension_numbers<[1], [0], [0], [1], [0, 0, 1, 1], [], []>} : vector<2x16xf32>, vector<16x1xf32>, vector<2x1xf32> -> vector<2x1xf32>
    %c0_20 = arith.constant 0 : index
    %c0_21 = arith.constant 0 : index
    %41 = vector.load %arg6[%c0_20, %c0_21] : memref<1x1xf32, #tpu.memory_space<vmem>>, vector<1x1xf32>
    %42 = vector.broadcast %41 : vector<1x1xf32> to vector<2x1xf32>
    %43 = arith.addf %40, %42 : vector<2x1xf32>
    %c0_22 = arith.constant 0 : index
    %c0_23 = arith.constant 0 : index
    %44 = vector.load %arg7[%c0_22, %c0_23] : memref<2x1xf32, #tpu.memory_space<vmem>>, vector<2x1xf32>
    tpu.vector_store %arg7[%c0_22, %c0_23], %43 {strides = array<i32>} : memref<2x1xf32, #tpu.memory_space<vmem>>, vector<2x1xf32>,
    return
  }
}

</mosaic_0001>

<llo_original>
// kernel: tpu_custom_call.1
$region0: #{tpu_custom_call.1}
  #allocation0 [shape = 'u32[]', space=smem, size = 0x4, offset = 0x4, fixed_abs, tag = 'smem constant byte address 0x4 - core index']
  #allocation1 [shape = 'u32[72,128]{1,0:T(1,128)}', space=vmem, size = 0x9000, scoped, tag = 'internal scratch']
  #allocation2 [shape = 'f32[1,1]{1,0:T(1,128)S(1)}', space=vmem, size = 0x200, scoped, tag = 'scoped memory for tpu_custom_call.1']
  %s0 = inlined_call_operand.vmem [shape: f32[102,20], index: 0, kind: input, shape index: {}]
  %s1 = inlined_call_operand.vmem [shape: f32[20,8], index: 1, kind: input, shape index: {}]
  %s2 = inlined_call_operand.vmem [shape: f32[1,8], index: 2, kind: input, shape index: {}]
  %s3 = inlined_call_operand.vmem [shape: f32[160,16], index: 3, kind: input, shape index: {}]
  %s4 = inlined_call_operand.vmem [shape: f32[1,16], index: 4, kind: input, shape index: {}]
  %s5 = inlined_call_operand.vmem [shape: f32[16,1], index: 5, kind: input, shape index: {}]
  %s6 = inlined_call_operand.<no memory space> [shape: f32[1,1], index: 6, kind: input, shape index: {}]
  %s7 = inlined_call_operand.vmem [shape: f32[2,1], index: 7, kind: output, shape index: {}]
  %s8 = sld [smem:[#allocation0]]
  $region38: #{tpu_custom_call.1} parent=0
    _
  %s10 = ssub.s32 1, %s8
  %s11 = scalar_select 0, %s10, %s8
  %v12 = vstv %s6
  %13 = vst [vmem:[#allocation2] sm:$0x1] %v12
  // Predicated region
  $region2: #{tpu_custom_call.1} parent=0 // pred_check
    _
  $region3: #{tpu_custom_call.1} parent=0 // pred_check_branch
    %15 = sbr.rel (0) target = $region5
  $region4: #{tpu_custom_call.1} parent=0 // pred_region
    _
  $region5: #{tpu_custom_call.1} parent=0 // pred_fallthru
    _
  // Predicated region
  $region6: #{tpu_custom_call.1} parent=0 // pred_check
    _
  $region7: #{tpu_custom_call.1} parent=0 // pred_check_branch
    %17 = sbr.rel (0) target = $region9
  $region8: #{tpu_custom_call.1} parent=0 // pred_region
    _
  $region9: #{tpu_custom_call.1} parent=0 // pred_fallthru
    _
  // Predicated region
  $region10: #{tpu_custom_call.1} parent=0 // pred_check
    _
  $region11: #{tpu_custom_call.1} parent=0 // pred_check_branch
    %19 = sbr.rel (0) target = $region13
  $region12: #{tpu_custom_call.1} parent=0 // pred_region
    _
  $region13: #{tpu_custom_call.1} parent=0 // pred_fallthru
    _
  // Predicated region
  $region14: #{tpu_custom_call.1} parent=0 // pred_check
    _
  $region15: #{tpu_custom_call.1} parent=0 // pred_check_branch
    %21 = sbr.rel (0) target = $region17
  $region16: #{tpu_custom_call.1} parent=0 // pred_region
    _
  $region17: #{tpu_custom_call.1} parent=0 // pred_fallthru
    _
  // Predicated region
  $region18: #{tpu_custom_call.1} parent=0 // pred_check
    _
  $region19: #{tpu_custom_call.1} parent=0 // pred_check_branch
    %23 = sbr.rel (0) target = $region21
  $region20: #{tpu_custom_call.1} parent=0 // pred_region
    _
  $region21: #{tpu_custom_call.1} parent=0 // pred_fallthru
    _
  // Predicated region
  $region22: #{tpu_custom_call.1} parent=0 // pred_check
    _
  $region23: #{tpu_custom_call.1} parent=0 // pred_check_branch
    %25 = sbr.rel (0) target = $region25
  $region24: #{tpu_custom_call.1} parent=0 // pred_region
    _
  $region25: #{tpu_custom_call.1} parent=0 // pred_fallthru
    _
  // Predicated region
  $region26: #{tpu_custom_call.1} parent=0 // pred_check
    _
  $region27: #{tpu_custom_call.1} parent=0 // pred_check_branch
    %27 = sbr.rel (0) target = $region29
  $region28: #{tpu_custom_call.1} parent=0 // pred_region
    _
  $region29: #{tpu_custom_call.1} parent=0 // pred_fallthru
    _
  %v28 = vld [vmem:[%s0] sm:$0xff]
  %v29 = vld [vmem:[%s0 + $0x8] sm:$0xff]
  %v30 = vld [vmem:[%s0 + $0x10] sm:$0xff]
  %v31 = vld [vmem:[%s0 + $0x18] sm:$0xff]
  %v32 = vld [vmem:[%s0 + $0x20] sm:$0xff]
  %v33 = vld [vmem:[%s0 + $0x28] sm:$0xff]
  %v34 = vld [vmem:[%s0 + $0x30] sm:$0xff]
  %v35 = vld [vmem:[%s0 + $0x38] sm:$0xff]
  %v36 = vld [vmem:[%s0 + $0x40] sm:$0xff]
  %v37 = vld [vmem:[%s0 + $0x48] sm:$0xff]
  %v38 = vld [vmem:[%s0 + $0x50] sm:$0xff]
  %v39 = vld [vmem:[%s0 + $0x58] sm:$0xff]
  %v40 = vld [vmem:[%s0 + $0x60] sm:$0x3f]
  %v41 = vld [vmem:[%s1] sm:$0xff]
  %v42 = vld [vmem:[%s1 + $0x8] sm:$0xff]
  %v43 = vld [vmem:[%s1 + $0x10] sm:$0xf]
  %v44 = vld [vmem:[%s2] sm:$0x1]
  %v46 = vperm.slane %v44, 0
  %vm48 = vcmask 162816
  %v50 = vsel %vm48, %v28, 0
  %v53 = vsel %vm48, %v29, 0
  %v56 = vsel %vm48, %v30, 0
  %v59 = vsel %vm48, %v31, 0
  %v62 = vsel %vm48, %v32, 0
  %v65 = vsel %vm48, %v33, 0
  %v68 = vsel %vm48, %v34, 0
  %v71 = vsel %vm48, %v35, 0
  %v74 = vsel %vm48, %v36, 0
  %v77 = vsel %vm48, %v37, 0
  %v80 = vsel %vm48, %v38, 0
  %v83 = vsel %vm48, %v39, 0
  %v86 = vsel %vm48, %v40, 0
  %vm88 = vcmask 1043456
  %v90 = vsel %vm88, %v43, 0
  %92 = vmatpush.msra.mxu0 0.0
  %93 = vmatpush.msra.mxu0 0.0
  %94 = vmatpush.msra.mxu0 0.0
  %95 = vmatpush.msra.mxu0 0.0
  %96 = vmatpush.msra.mxu0 0.0
  %97 = vmatpush.msra.mxu0 0.0
  %98 = vmatpush.msra.mxu0 0.0
  %99 = vmatpush.msra.mxu0 0.0
  %100 = vmatpush.msra.mxu0 0.0
  %101 = vmatpush.msra.mxu0 0.0
  %102 = vmatpush.msra.mxu0 0.0
  %103 = vmatpush.msra.mxu0 0.0
  %104 = vmatpush.msra.mxu0 0.0
  %105 = vmatpush.msra.mxu0 %v90
  %106 = vmatpush.msra.mxu0 %v42
  %107 = vmatpush.msra.mxu0 %v41
  %108 = vmatmul.f32.gmra.mxu0 %v50
  %v109 = vpop.f32.mrf.mxu0
  %v110 = vadd.f32 %v46, %v109
  %111 = vmatmul.f32.gmra.mxu0 %v53
  %v112 = vpop.f32.mrf.mxu0
  %v113 = vadd.f32 %v46, %v112
  %114 = vmatmul.f32.gmra.mxu0 %v56
  %v115 = vpop.f32.mrf.mxu0
  %v116 = vadd.f32 %v46, %v115
  %117 = vmatmul.f32.gmra.mxu0 %v59
  %v118 = vpop.f32.mrf.mxu0
  %v119 = vadd.f32 %v46, %v118
  %120 = vmatmul.f32.gmra.mxu0 %v62
  %v121 = vpop.f32.mrf.mxu0
  %v122 = vadd.f32 %v46, %v121
  %123 = vmatmul.f32.gmra.mxu0 %v65
  %v124 = vpop.f32.mrf.mxu0
  %v125 = vadd.f32 %v46, %v124
  %126 = vmatmul.f32.gmra.mxu0 %v68
  %v127 = vpop.f32.mrf.mxu0
  %v128 = vadd.f32 %v46, %v127
  %129 = vmatmul.f32.gmra.mxu0 %v71
  %v130 = vpop.f32.mrf.mxu0
  %v131 = vadd.f32 %v46, %v130
  %132 = vmatmul.f32.gmra.mxu0 %v74
  %v133 = vpop.f32.mrf.mxu0
  %v134 = vadd.f32 %v46, %v133
  %135 = vmatmul.f32.gmra.mxu0 %v77
  %v136 = vpop.f32.mrf.mxu0
  %v137 = vadd.f32 %v46, %v136
  %138 = vmatmul.f32.gmra.mxu0 %v80
  %v139 = vpop.f32.mrf.mxu0
  %v140 = vadd.f32 %v46, %v139
  %141 = vmatmul.f32.gmra.mxu0 %v83
  %v142 = vpop.f32.mrf.mxu0
  %v143 = vadd.f32 %v46, %v142
  %144 = vmatmul.f32.gmra.mxu0 %v86
  %v145 = vpop.f32.mrf.mxu0
  %v146 = vadd.f32 %v46, %v145
  %147 = vdwg.mxu0
  %v148 = vmax.f32 %v110, 0.0
  %v149 = vmax.f32 %v113, 0.0
  %v150 = vmax.f32 %v116, 0.0
  %v151 = vmax.f32 %v119, 0.0
  %v152 = vmax.f32 %v122, 0.0
  %v153 = vmax.f32 %v125, 0.0
  %v154 = vmax.f32 %v128, 0.0
  %v155 = vmax.f32 %v131, 0.0
  %v156 = vmax.f32 %v134, 0.0
  %v157 = vmax.f32 %v137, 0.0
  %v158 = vmax.f32 %v140, 0.0
  %v159 = vmax.f32 %v143, 0.0
  %v160 = vmax.f32 %v146, 0.0
  %v174 = vrot.slane %v148, 1
  %v175 = vrot.slane %v148, 2
  %v176 = vrot.slane %v148, 3
  %v177 = vrot.slane %v148, 4
  %v178 = vrot.slane %v148, 5
  %v179 = vrot.slane %v148, 6
  %v180 = vrot.slane %v148, 7
  %v181 = vrot.slane %v149, 1
  %v182 = vrot.slane %v149, 2
  %v183 = vrot.slane %v149, 3
  %v184 = vrot.slane %v149, 4
  %v185 = vrot.slane %v149, 5
  %v186 = vrot.slane %v149, 6
  %v187 = vrot.slane %v149, 7
  %v188 = vrot.slane %v150, 1
  %v189 = vrot.slane %v150, 2
  %v190 = vrot.slane %v150, 3
  %v191 = vrot.slane %v150, 4
  %v192 = vrot.slane %v150, 5
  %v193 = vrot.slane %v150, 6
  %v194 = vrot.slane %v150, 7
  %v195 = vrot.slane %v151, 1
  %v196 = vrot.slane %v151, 2
  %v197 = vrot.slane %v151, 3
  %v198 = vrot.slane %v151, 4
  %v199 = vrot.slane %v151, 5
  %v200 = vrot.slane %v151, 6
  %v201 = vrot.slane %v151, 7
  %v202 = vrot.slane %v152, 1
  %v203 = vrot.slane %v152, 2
  %v204 = vrot.slane %v152, 3
  %v205 = vrot.slane %v152, 4
  %v206 = vrot.slane %v152, 5
  %v207 = vrot.slane %v152, 6
  %v208 = vrot.slane %v152, 7
  %v209 = vrot.slane %v153, 1
  %v210 = vrot.slane %v153, 2
  %v211 = vrot.slane %v153, 3
  %v212 = vrot.slane %v153, 4
  %v213 = vrot.slane %v153, 5
  %v214 = vrot.slane %v153, 6
  %v215 = vrot.slane %v153, 7
  %v216 = vrot.slane %v154, 1
  %v217 = vrot.slane %v154, 3
  %v218 = vrot.slane %v154, 4
  %v219 = vrot.slane %v154, 5
  %v220 = vrot.slane %v154, 6
  %v221 = vrot.slane %v154, 7
  %v222 = vrot.slane %v155, 1
  %v223 = vrot.slane %v155, 2
  %v224 = vrot.slane %v155, 3
  %v225 = vrot.slane %v155, 4
  %v226 = vrot.slane %v155, 5
  %v227 = vrot.slane %v155, 6
  %v228 = vrot.slane %v155, 7
  %v229 = vrot.slane %v156, 1
  %v230 = vrot.slane %v156, 2
  %v231 = vrot.slane %v156, 3
  %v232 = vrot.slane %v156, 4
  %v233 = vrot.slane %v156, 5
  %v234 = vrot.slane %v156, 6
  %v235 = vrot.slane %v156, 7
  %v236 = vrot.slane %v157, 1
  %v237 = vrot.slane %v157, 2
  %v238 = vrot.slane %v157, 3
  %v239 = vrot.slane %v157, 4
  %v240 = vrot.slane %v157, 5
  %v241 = vrot.slane %v157, 6
  %v242 = vrot.slane %v157, 7
  %v243 = vrot.slane %v158, 1
  %v244 = vrot.slane %v158, 2
  %v245 = vrot.slane %v158, 3
  %v246 = vrot.slane %v158, 4
  %v247 = vrot.slane %v158, 5
  %v248 = vrot.slane %v158, 6
  %v249 = vrot.slane %v158, 7
  %v250 = vrot.slane %v159, 1
  %v251 = vrot.slane %v159, 2
  %v252 = vrot.slane %v159, 3
  %v253 = vrot.slane %v159, 4
  %v254 = vrot.slane %v159, 5
  %v255 = vrot.slane %v159, 6
  %v256 = vrot.slane %v159, 7
  %v257 = vrot.slane %v160, 1
  %v258 = vrot.slane %v160, 2
  %v259 = vrot.slane %v160, 3
  %v260 = vrot.slane %v160, 4
  %v348 = vadd.f32 %v148, %v174
  %v349 = vadd.f32 %v175, %v176
  %v350 = vadd.f32 %v177, %v178
  %v351 = vadd.f32 %v179, %v180
  %v352 = vadd.f32 %v149, %v181
  %v353 = vadd.f32 %v182, %v183
  %v354 = vadd.f32 %v184, %v185
  %v355 = vadd.f32 %v186, %v187
  %v356 = vadd.f32 %v150, %v188
  %v357 = vadd.f32 %v189, %v190
  %v358 = vadd.f32 %v191, %v192
  %v359 = vadd.f32 %v193, %v194
  %v360 = vadd.f32 %v151, %v195
  %v361 = vadd.f32 %v196, %v197
  %v362 = vadd.f32 %v198, %v199
  %v363 = vadd.f32 %v200, %v201
  %v364 = vadd.f32 %v152, %v202
  %v365 = vadd.f32 %v203, %v204
  %v366 = vadd.f32 %v205, %v206
  %v367 = vadd.f32 %v207, %v208
  %v368 = vadd.f32 %v153, %v209
  %v369 = vadd.f32 %v210, %v211
  %v370 = vadd.f32 %v212, %v213
  %v371 = vadd.f32 %v214, %v215
  %v372 = vadd.f32 %v154, %v216
  %v373 = vadd.f32 %v217, %v218
  %v374 = vadd.f32 %v219, %v220
  %v375 = vadd.f32 %v221, %v155
  %v376 = vadd.f32 %v222, %v223
  %v377 = vadd.f32 %v224, %v225
  %v378 = vadd.f32 %v226, %v227
  %v379 = vadd.f32 %v228, %v156
  %v380 = vadd.f32 %v229, %v230
  %v381 = vadd.f32 %v231, %v232
  %v382 = vadd.f32 %v233, %v234
  %v383 = vadd.f32 %v235, %v157
  %v384 = vadd.f32 %v236, %v237
  %v385 = vadd.f32 %v238, %v239
  %v386 = vadd.f32 %v240, %v241
  %v387 = vadd.f32 %v242, %v158
  %v388 = vadd.f32 %v243, %v244
  %v389 = vadd.f32 %v245, %v246
  %v390 = vadd.f32 %v247, %v248
  %v391 = vadd.f32 %v249, %v159
  %v392 = vadd.f32 %v250, %v251
  %v393 = vadd.f32 %v252, %v253
  %v394 = vadd.f32 %v254, %v255
  %v395 = vadd.f32 %v256, %v160
  %v396 = vadd.f32 %v257, %v258
  %v397 = vadd.f32 %v259, %v260
  %v398 = vmul.f32 %v348, 0.5
  %v399 = vmul.f32 %v349, 0.5
  %v400 = vmul.f32 %v350, 0.5
  %v401 = vmul.f32 %v351, 0.5
  %v402 = vmul.f32 %v352, 0.5
  %v403 = vmul.f32 %v353, 0.5
  %v404 = vmul.f32 %v354, 0.5
  %v405 = vmul.f32 %v355, 0.5
  %v406 = vmul.f32 %v356, 0.5
  %v407 = vmul.f32 %v357, 0.5
  %v408 = vmul.f32 %v358, 0.5
  %v409 = vmul.f32 %v359, 0.5
  %v410 = vmul.f32 %v360, 0.5
  %v411 = vmul.f32 %v361, 0.5
  %v412 = vmul.f32 %v362, 0.5
  %v413 = vmul.f32 %v363, 0.5
  %v414 = vmul.f32 %v364, 0.5
  %v415 = vmul.f32 %v365, 0.5
  %v416 = vmul.f32 %v366, 0.5
  %v417 = vmul.f32 %v367, 0.5
  %v418 = vmul.f32 %v368, 0.5
  %v419 = vmul.f32 %v369, 0.5
  %v420 = vmul.f32 %v370, 0.5
  %v421 = vmul.f32 %v371, 0.5
  %v422 = vmul.f32 %v372, 0.5
  %v423 = vmul.f32 %v373, 0.5
  %v424 = vmul.f32 %v374, 0.5
  %v425 = vmul.f32 %v375, 0.5
  %v426 = vmul.f32 %v376, 0.5
  %v427 = vmul.f32 %v377, 0.5
  %v428 = vmul.f32 %v378, 0.5
  %v429 = vmul.f32 %v379, 0.5
  %v430 = vmul.f32 %v380, 0.5
  %v431 = vmul.f32 %v381, 0.5
  %v432 = vmul.f32 %v382, 0.5
  %v433 = vmul.f32 %v383, 0.5
  %v434 = vmul.f32 %v384, 0.5
  %v435 = vmul.f32 %v385, 0.5
  %v436 = vmul.f32 %v386, 0.5
  %v437 = vmul.f32 %v387, 0.5
  %v438 = vmul.f32 %v388, 0.5
  %v439 = vmul.f32 %v389, 0.5
  %v440 = vmul.f32 %v390, 0.5
  %v441 = vmul.f32 %v391, 0.5
  %v442 = vmul.f32 %v392, 0.5
  %v443 = vmul.f32 %v393, 0.5
  %v444 = vmul.f32 %v394, 0.5
  %v445 = vmul.f32 %v395, 0.5
  %v446 = vmul.f32 %v396, 0.5
  %v447 = vmul.f32 %v397, 0.5
  %s498 = scalar_lea.vmem [#allocation1], 4
  %499 = vst [vmem:[%s498] ss:$9 sm:$0xff] %v398
  %s500 = scalar_lea.vmem [#allocation1], 5
  %501 = vst [vmem:[%s500] ss:$9 sm:$0xff] %v399
  %s502 = scalar_lea.vmem [#allocation1], 6
  %503 = vst [vmem:[%s502] ss:$9 sm:$0xff] %v400
  %s504 = scalar_lea.vmem [#allocation1], 7
  %505 = vst [vmem:[%s504] ss:$9 sm:$0xff] %v401
  %v506 = vld [vmem:[#allocation1] sm:$0xff]
  %507 = vst [vmem:[#allocation1] ss:$9 sm:$0xff] %v402
  %s508 = scalar_lea.vmem [#allocation1], 1
  %509 = vst [vmem:[%s508] ss:$9 sm:$0xff] %v403
  %s510 = scalar_lea.vmem [#allocation1], 2
  %511 = vst [vmem:[%s510] ss:$9 sm:$0xff] %v404
  %s512 = scalar_lea.vmem [#allocation1], 3
  %513 = vst [vmem:[%s512] ss:$9 sm:$0xff] %v405
  %514 = vst [vmem:[%s498] ss:$9 sm:$0xff] %v406
  %515 = vst [vmem:[%s500] ss:$9 sm:$0xff] %v407
  %516 = vst [vmem:[%s502] ss:$9 sm:$0xff] %v408
  %517 = vst [vmem:[%s504] ss:$9 sm:$0xff] %v409
  %v518 = vld [vmem:[#allocation1] sm:$0xff]
  %519 = vst [vmem:[#allocation1] ss:$9 sm:$0xff] %v410
  %520 = vst [vmem:[%s508] ss:$9 sm:$0xff] %v411
  %521 = vst [vmem:[%s510] ss:$9 sm:$0xff] %v412
  %522 = vst [vmem:[%s512] ss:$9 sm:$0xff] %v413
  %523 = vst [vmem:[%s498] ss:$9 sm:$0xff] %v414
  %524 = vst [vmem:[%s500] ss:$9 sm:$0xff] %v415
  %525 = vst [vmem:[%s502] ss:$9 sm:$0xff] %v416
  %526 = vst [vmem:[%s504] ss:$9 sm:$0xff] %v417
  %v527 = vld [vmem:[#allocation1] sm:$0xff]
  %528 = vst [vmem:[#allocation1] ss:$9 sm:$0xff] %v418
  %529 = vst [vmem:[%s508] ss:$9 sm:$0xff] %v419
  %530 = vst [vmem:[%s510] ss:$9 sm:$0xff] %v420
  %531 = vst [vmem:[%s512] ss:$9 sm:$0xff] %v421
  %532 = vst [vmem:[%s498] ss:$9 sm:$0xff] %v422
  %v533 = vld [vmem:[#allocation1] sm:$0xff]
  %534 = vst [vmem:[%s498] ss:$9 sm:$0xff] %v423
  %535 = vst [vmem:[%s500] ss:$9 sm:$0xff] %v424
  %536 = vst [vmem:[%s502] ss:$9 sm:$0xff] %v425
  %537 = vst [vmem:[%s504] ss:$9 sm:$0xff] %v426
  %v538 = vld [vmem:[#allocation1] sm:$0xff]
  %539 = vst [vmem:[#allocation1] ss:$9 sm:$0xff] %v427
  %540 = vst [vmem:[%s508] ss:$9 sm:$0xff] %v428
  %541 = vst [vmem:[%s510] ss:$9 sm:$0xff] %v429
  %542 = vst [vmem:[%s512] ss:$9 sm:$0xff] %v430
  %543 = vst [vmem:[%s498] ss:$9 sm:$0xff] %v431
  %544 = vst [vmem:[%s500] ss:$9 sm:$0xff] %v432
  %545 = vst [vmem:[%s502] ss:$9 sm:$0xff] %v433
  %546 = vst [vmem:[%s504] ss:$9 sm:$0xff] %v434
  %v547 = vld [vmem:[#allocation1] sm:$0xff]
  %548 = vst [vmem:[#allocation1] ss:$9 sm:$0xff] %v435
  %549 = vst [vmem:[%s508] ss:$9 sm:$0xff] %v436
  %550 = vst [vmem:[%s510] ss:$9 sm:$0xff] %v437
  %551 = vst [vmem:[%s512] ss:$9 sm:$0xff] %v438
  %552 = vst [vmem:[%s498] ss:$9 sm:$0xff] %v439
  %553 = vst [vmem:[%s500] ss:$9 sm:$0xff] %v440
  %554 = vst [vmem:[%s502] ss:$9 sm:$0xff] %v441
  %555 = vst [vmem:[%s504] ss:$9 sm:$0xff] %v442
  %v556 = vld [vmem:[#allocation1] sm:$0xff]
  %557 = vst [vmem:[#allocation1] ss:$9 sm:$0xff] %v443
  %558 = vst [vmem:[%s508] ss:$9 sm:$0xff] %v444
  %559 = vst [vmem:[%s510] ss:$9 sm:$0xff] %v445
  %560 = vst [vmem:[%s512] ss:$9 sm:$0xff] %v446
  %561 = vst [vmem:[%s498] ss:$9 sm:$0xff] %v447
  %v562 = vld [vmem:[#allocation1] sm:$0xff]
  %v571 = vsel %vm88, 0.0, %v506
  %v572 = vsel %vm88, 0.0, %v538
  %vm573 = vcmask 1044480
  %v574 = vsel %vm573, %v533, 0.0
  %v575 = vsel %vm573, %v562, 0.0
  %v580 = vrot.slane %v571, 2
  %v581 = vrot.slane %v571, 4
  %v582 = vrot.slane %v571, 6
  %v583 = vrot.slane %v518, 2
  %v584 = vrot.slane %v518, 4
  %v585 = vrot.slane %v518, 6
  %v586 = vrot.slane %v527, 2
  %v587 = vrot.slane %v527, 4
  %v588 = vrot.slane %v527, 6
  %v589 = vrot.slane %v574, 2
  %v590 = vrot.slane %v574, 4
  %v591 = vrot.slane %v572, 2
  %v592 = vrot.slane %v572, 4
  %v593 = vrot.slane %v572, 6
  %v594 = vrot.slane %v547, 2
  %v595 = vrot.slane %v547, 4
  %v596 = vrot.slane %v547, 6
  %v597 = vrot.slane %v556, 2
  %v598 = vrot.slane %v556, 4
  %v599 = vrot.slane %v556, 6
  %v600 = vrot.slane %v575, 2
  %v601 = vrot.slane %v575, 4
  %v624 = vrot.slane %v583, 4
  %vm625 = vcmask 1047556
  %v626 = vsel %vm625, %v624, %v571
  %v628 = vunpack.c.l.s4 1934713408
  %v629 = vunpack.c.0.s8 %v628
  %v630 = vperm.slane %v626, %v629
  %v631 = vrot.slane %v630, 4
  %v632 = vsel %vm625, 0.0, %v631
  %v633 = vrot.slane %v584, 4
  %v634 = vsel %vm625, %v633, %v580
  %v636 = vunpack.c.l.s4 1934713408
  %v637 = vunpack.c.0.s8 %v636
  %v638 = vperm.slane %v634, %v637
  %v639 = vrot.slane %v638, 4
  %v640 = vsel %vm625, 0.0, %v639
  %v641 = vrot.slane %v585, 4
  %v642 = vsel %vm625, %v641, %v581
  %v644 = vunpack.c.l.s4 1934713408
  %v645 = vunpack.c.0.s8 %v644
  %v646 = vperm.slane %v642, %v645
  %v647 = vrot.slane %v646, 4
  %v648 = vsel %vm625, 0.0, %v647
  %v649 = vrot.slane %v527, 4
  %v650 = vsel %vm625, %v649, %v582
  %v652 = vunpack.c.l.s4 1934713408
  %v653 = vunpack.c.0.s8 %v652
  %v654 = vperm.slane %v650, %v653
  %v655 = vrot.slane %v654, 4
  %v656 = vsel %vm625, 0.0, %v655
  %v657 = vrot.slane %v586, 4
  %v658 = vsel %vm625, %v657, %v518
  %v660 = vunpack.c.l.s4 1934713408
  %v661 = vunpack.c.0.s8 %v660
  %v662 = vperm.slane %v658, %v661
  %v663 = vrot.slane %v662, 4
  %v664 = vsel %vm625, 0.0, %v663
  %v665 = vrot.slane %v594, 4
  %v666 = vsel %vm625, %v665, %v572
  %v668 = vunpack.c.l.s4 1934713408
  %v669 = vunpack.c.0.s8 %v668
  %v670 = vperm.slane %v666, %v669
  %v671 = vrot.slane %v670, 4
  %v672 = vsel %vm625, 0.0, %v671
  %v673 = vrot.slane %v595, 4
  %v674 = vsel %vm625, %v673, %v591
  %v676 = vunpack.c.l.s4 1934713408
  %v677 = vunpack.c.0.s8 %v676
  %v678 = vperm.slane %v674, %v677
  %v679 = vrot.slane %v678, 4
  %v680 = vsel %vm625, 0.0, %v679
  %v681 = vrot.slane %v596, 4
  %v682 = vsel %vm625, %v681, %v592
  %v684 = vunpack.c.l.s4 1934713408
  %v685 = vunpack.c.0.s8 %v684
  %v686 = vperm.slane %v682, %v685
  %v687 = vrot.slane %v686, 4
  %v688 = vsel %vm625, 0.0, %v687
  %v689 = vrot.slane %v556, 4
  %v690 = vsel %vm625, %v689, %v593
  %v692 = vunpack.c.l.s4 1934713408
  %v693 = vunpack.c.0.s8 %v692
  %v694 = vperm.slane %v690, %v693
  %v695 = vrot.slane %v694, 4
  %v696 = vsel %vm625, 0.0, %v695
  %v697 = vrot.slane %v597, 4
  %v698 = vsel %vm625, %v697, %v547
  %v700 = vunpack.c.l.s4 1934713408
  %v701 = vunpack.c.0.s8 %v700
  %v702 = vperm.slane %v698, %v701
  %v703 = vrot.slane %v702, 4
  %v704 = vsel %vm625, 0.0, %v703
  %707 = vst [vmem:[#allocation1] ss:$4 sm:$0xff] %v632
  %v708 = vld.sshfl [vmem:[#allocation1] sm:$0xff pattern:$0x73625140]
  %s709 = scalar_lea.vmem [#allocation1], 32
  %710 = vst [vmem:[%s709] ss:$4 sm:$0xff] %v672
  %v711 = vld.sshfl [vmem:[#allocation1 + $0x20] sm:$0xff pattern:$0x73625140]
  %712 = vrot.lane.b32.xlu0 %v708, 8
  %v713 = vpop.permute.xlu0 %712
  %714 = vrot.lane.b32.xlu0 %v711, 8
  %v715 = vpop.permute.xlu0 %714
  %720 = vst [vmem:[#allocation1] ss:$4 sm:$0xff] %v638
  %v721 = vld.sshfl [vmem:[#allocation1] sm:$0xff pattern:$0x73625140]
  %s722 = scalar_lea.vmem [#allocation1], 32
  %723 = vst [vmem:[%s722] ss:$4 sm:$0xff] %v678
  %v724 = vld.sshfl [vmem:[#allocation1 + $0x20] sm:$0xff pattern:$0x73625140]
  %725 = vrot.lane.b32.xlu0 %v721, 16
  %v726 = vpop.permute.xlu0 %725
  %727 = vrot.lane.b32.xlu0 %v724, 16
  %v728 = vpop.permute.xlu0 %727
  %733 = vst [vmem:[#allocation1] ss:$4 sm:$0xff] %v640
  %v734 = vld.sshfl [vmem:[#allocation1] sm:$0xff pattern:$0x73625140]
  %s735 = scalar_lea.vmem [#allocation1], 32
  %736 = vst [vmem:[%s735] ss:$4 sm:$0xff] %v680
  %v737 = vld.sshfl [vmem:[#allocation1 + $0x20] sm:$0xff pattern:$0x73625140]
  %738 = vrot.lane.b32.xlu0 %v734, 24
  %v739 = vpop.permute.xlu0 %738
  %740 = vrot.lane.b32.xlu0 %v737, 24
  %v741 = vpop.permute.xlu0 %740
  %746 = vst [vmem:[#allocation1] ss:$4 sm:$0xff] %v646
  %v747 = vld.sshfl [vmem:[#allocation1] sm:$0xff pattern:$0x73625140]
  %s748 = scalar_lea.vmem [#allocation1], 32
  %749 = vst [vmem:[%s748] ss:$4 sm:$0xff] %v686
  %v750 = vld.sshfl [vmem:[#allocation1 + $0x20] sm:$0xff pattern:$0x73625140]
  %751 = vrot.lane.b32.xlu0 %v747, 32
  %v752 = vpop.permute.xlu0 %751
  %753 = vrot.lane.b32.xlu0 %v750, 32
  %v754 = vpop.permute.xlu0 %753
  %759 = vst [vmem:[#allocation1] ss:$4 sm:$0xff] %v648
  %v760 = vld.sshfl [vmem:[#allocation1] sm:$0xff pattern:$0x73625140]
  %s761 = scalar_lea.vmem [#allocation1], 32
  %762 = vst [vmem:[%s761] ss:$4 sm:$0xff] %v688
  %v763 = vld.sshfl [vmem:[#allocation1 + $0x20] sm:$0xff pattern:$0x73625140]
  %764 = vrot.lane.b32.xlu0 %v760, 40
  %v765 = vpop.permute.xlu0 %764
  %766 = vrot.lane.b32.xlu0 %v763, 40
  %v767 = vpop.permute.xlu0 %766
  %772 = vst [vmem:[#allocation1] ss:$4 sm:$0xff] %v654
  %v773 = vld.sshfl [vmem:[#allocation1] sm:$0xff pattern:$0x73625140]
  %s774 = scalar_lea.vmem [#allocation1], 32
  %775 = vst [vmem:[%s774] ss:$4 sm:$0xff] %v694
  %v776 = vld.sshfl [vmem:[#allocation1 + $0x20] sm:$0xff pattern:$0x73625140]
  %777 = vrot.lane.b32.xlu0 %v773, 48
  %v778 = vpop.permute.xlu0 %777
  %779 = vrot.lane.b32.xlu0 %v776, 48
  %v780 = vpop.permute.xlu0 %779
  %785 = vst [vmem:[#allocation1] ss:$4 sm:$0xff] %v656
  %v786 = vld.sshfl [vmem:[#allocation1] sm:$0xff pattern:$0x73625140]
  %s787 = scalar_lea.vmem [#allocation1], 32
  %788 = vst [vmem:[%s787] ss:$4 sm:$0xff] %v696
  %v789 = vld.sshfl [vmem:[#allocation1 + $0x20] sm:$0xff pattern:$0x73625140]
  %790 = vrot.lane.b32.xlu0 %v786, 56
  %v791 = vpop.permute.xlu0 %790
  %792 = vrot.lane.b32.xlu0 %v789, 56
  %v793 = vpop.permute.xlu0 %792
  %798 = vst [vmem:[#allocation1] ss:$4 sm:$0xff] %v662
  %v799 = vld.sshfl [vmem:[#allocation1] sm:$0xff pattern:$0x73625140]
  %s800 = scalar_lea.vmem [#allocation1], 32
  %801 = vst [vmem:[%s800] ss:$4 sm:$0xff] %v702
  %v802 = vld.sshfl [vmem:[#allocation1 + $0x20] sm:$0xff pattern:$0x73625140]
  %803 = vrot.lane.b32.xlu0 %v799, 64
  %v804 = vpop.permute.xlu0 %803
  %805 = vrot.lane.b32.xlu0 %v802, 64
  %v806 = vpop.permute.xlu0 %805
  %811 = vst [vmem:[#allocation1] ss:$4 sm:$0xff] %v664
  %v812 = vld.sshfl [vmem:[#allocation1] sm:$0xff pattern:$0x73625140]
  %s813 = scalar_lea.vmem [#allocation1], 32
  %814 = vst [vmem:[%s813] ss:$4 sm:$0xff] %v704
  %v815 = vld.sshfl [vmem:[#allocation1 + $0x20] sm:$0xff pattern:$0x73625140]
  %816 = vrot.lane.b32.xlu0 %v812, 72
  %v817 = vpop.permute.xlu0 %816
  %818 = vrot.lane.b32.xlu0 %v815, 72
  %v819 = vpop.permute.xlu0 %818
  %vm822 = vcmask 64512
  %v823 = vsel %vm822, %v630, %v713
  %v824 = vsel %vm822, %v670, %v715
  %vm825 = vcmask 130048
  %v826 = vsel %vm825, %v823, %v726
  %v827 = vsel %vm825, %v824, %v728
  %vm828 = vcmask 195584
  %v829 = vsel %vm828, %v826, %v739
  %v830 = vsel %vm828, %v827, %v741
  %vm831 = vcmask 261120
  %v832 = vsel %vm831, %v829, %v752
  %v833 = vsel %vm831, %v830, %v754
  %vm834 = vcmask 326656
  %v835 = vsel %vm834, %v832, %v765
  %v836 = vsel %vm834, %v833, %v767
  %vm837 = vcmask 392192
  %v838 = vsel %vm837, %v835, %v778
  %v839 = vsel %vm837, %v836, %v780
  %vm840 = vcmask 457728
  %v841 = vsel %vm840, %v838, %v791
  %v842 = vsel %vm840, %v839, %v793
  %vm843 = vcmask 523264
  %v844 = vsel %vm843, %v841, %v804
  %v845 = vsel %vm843, %v842, %v806
  %vm846 = vcmask 588800
  %v847 = vsel %vm846, %v844, %v817
  %v848 = vsel %vm846, %v845, %v819
  %v849 = vrot.slane %v587, 4
  %v850 = vsel %vm625, %v849, %v583
  %v852 = vunpack.c.l.s4 1934713408
  %v853 = vunpack.c.0.s8 %v852
  %v854 = vperm.slane %v850, %v853
  %v855 = vrot.slane %v854, 4
  %v856 = vsel %vm625, 0.0, %v855
  %v857 = vrot.slane %v588, 4
  %v858 = vsel %vm625, %v857, %v584
  %v860 = vunpack.c.l.s4 1934713408
  %v861 = vunpack.c.0.s8 %v860
  %v862 = vperm.slane %v858, %v861
  %v863 = vrot.slane %v862, 4
  %v864 = vsel %vm625, 0.0, %v863
  %v865 = vrot.slane %v574, 4
  %v866 = vsel %vm625, %v865, %v585
  %v868 = vunpack.c.l.s4 1934713408
  %v869 = vunpack.c.0.s8 %v868
  %v870 = vperm.slane %v866, %v869
  %v871 = vrot.slane %v870, 4
  %v872 = vsel %vm625, 0.0, %v871
  %v873 = vrot.slane %v589, 4
  %v874 = vsel %vm625, %v873, %v527
  %v876 = vunpack.c.l.s4 1934713408
  %v877 = vunpack.c.0.s8 %v876
  %v878 = vperm.slane %v874, %v877
  %v879 = vrot.slane %v878, 4
  %v880 = vsel %vm625, 0.0, %v879
  %v881 = vrot.slane %v590, 4
  %v882 = vsel %vm625, %v881, %v586
  %v884 = vunpack.c.l.s4 1934713408
  %v885 = vunpack.c.0.s8 %v884
  %v886 = vperm.slane %v882, %v885
  %v887 = vrot.slane %v886, 4
  %v888 = vsel %vm625, 0.0, %v887
  %v889 = vrot.slane %v598, 4
  %v890 = vsel %vm625, %v889, %v594
  %v892 = vunpack.c.l.s4 1934713408
  %v893 = vunpack.c.0.s8 %v892
  %v894 = vperm.slane %v890, %v893
  %v895 = vrot.slane %v894, 4
  %v896 = vsel %vm625, 0.0, %v895
  %v897 = vrot.slane %v599, 4
  %v898 = vsel %vm625, %v897, %v595
  %v900 = vunpack.c.l.s4 1934713408
  %v901 = vunpack.c.0.s8 %v900
  %v902 = vperm.slane %v898, %v901
  %v903 = vrot.slane %v902, 4
  %v904 = vsel %vm625, 0.0, %v903
  %v905 = vrot.slane %v575, 4
  %v906 = vsel %vm625, %v905, %v596
  %v908 = vunpack.c.l.s4 1934713408
  %v909 = vunpack.c.0.s8 %v908
  %v910 = vperm.slane %v906, %v909
  %v911 = vrot.slane %v910, 4
  %v912 = vsel %vm625, 0.0, %v911
  %v913 = vrot.slane %v600, 4
  %v914 = vsel %vm625, %v913, %v556
  %v916 = vunpack.c.l.s4 1934713408
  %v917 = vunpack.c.0.s8 %v916
  %v918 = vperm.slane %v914, %v917
  %v919 = vrot.slane %v918, 4
  %v920 = vsel %vm625, 0.0, %v919
  %v921 = vrot.slane %v601, 4
  %v922 = vsel %vm625, %v921, %v597
  %v924 = vunpack.c.l.s4 1934713408
  %v925 = vunpack.c.0.s8 %v924
  %v926 = vperm.slane %v922, %v925
  %v927 = vrot.slane %v926, 4
  %v928 = vsel %vm625, 0.0, %v927
  %931 = vst [vmem:[#allocation1] ss:$4 sm:$0xff] %v856
  %v932 = vld.sshfl [vmem:[#allocation1] sm:$0xff pattern:$0x73625140]
  %s933 = scalar_lea.vmem [#allocation1], 32
  %934 = vst [vmem:[%s933] ss:$4 sm:$0xff] %v896
  %v935 = vld.sshfl [vmem:[#allocation1 + $0x20] sm:$0xff pattern:$0x73625140]
  %936 = vrot.lane.b32.xlu0 %v932, 8
  %v937 = vpop.permute.xlu0 %936
  %938 = vrot.lane.b32.xlu0 %v935, 8
  %v939 = vpop.permute.xlu0 %938
  %944 = vst [vmem:[#allocation1] ss:$4 sm:$0xff] %v862
  %v945 = vld.sshfl [vmem:[#allocation1] sm:$0xff pattern:$0x73625140]
  %s946 = scalar_lea.vmem [#allocation1], 32
  %947 = vst [vmem:[%s946] ss:$4 sm:$0xff] %v902
  %v948 = vld.sshfl [vmem:[#allocation1 + $0x20] sm:$0xff pattern:$0x73625140]
  %949 = vrot.lane.b32.xlu0 %v945, 16
  %v950 = vpop.permute.xlu0 %949
  %951 = vrot.lane.b32.xlu0 %v948, 16
  %v952 = vpop.permute.xlu0 %951
  %957 = vst [vmem:[#allocation1] ss:$4 sm:$0xff] %v864
  %v958 = vld.sshfl [vmem:[#allocation1] sm:$0xff pattern:$0x73625140]
  %s959 = scalar_lea.vmem [#allocation1], 32
  %960 = vst [vmem:[%s959] ss:$4 sm:$0xff] %v904
  %v961 = vld.sshfl [vmem:[#allocation1 + $0x20] sm:$0xff pattern:$0x73625140]
  %962 = vrot.lane.b32.xlu0 %v958, 24
  %v963 = vpop.permute.xlu0 %962
  %964 = vrot.lane.b32.xlu0 %v961, 24
  %v965 = vpop.permute.xlu0 %964
  %970 = vst [vmem:[#allocation1] ss:$4 sm:$0xff] %v870
  %v971 = vld.sshfl [vmem:[#allocation1] sm:$0xff pattern:$0x73625140]
  %s972 = scalar_lea.vmem [#allocation1], 32
  %973 = vst [vmem:[%s972] ss:$4 sm:$0xff] %v910
  %v974 = vld.sshfl [vmem:[#allocation1 + $0x20] sm:$0xff pattern:$0x73625140]
  %975 = vrot.lane.b32.xlu0 %v971, 32
  %v976 = vpop.permute.xlu0 %975
  %977 = vrot.lane.b32.xlu0 %v974, 32
  %v978 = vpop.permute.xlu0 %977
  %983 = vst [vmem:[#allocation1] ss:$4 sm:$0xff] %v872
  %v984 = vld.sshfl [vmem:[#allocation1] sm:$0xff pattern:$0x73625140]
  %s985 = scalar_lea.vmem [#allocation1], 32
  %986 = vst [vmem:[%s985] ss:$4 sm:$0xff] %v912
  %v987 = vld.sshfl [vmem:[#allocation1 + $0x20] sm:$0xff pattern:$0x73625140]
  %988 = vrot.lane.b32.xlu0 %v984, 40
  %v989 = vpop.permute.xlu0 %988
  %990 = vrot.lane.b32.xlu0 %v987, 40
  %v991 = vpop.permute.xlu0 %990
  %996 = vst [vmem:[#allocation1] ss:$4 sm:$0xff] %v878
  %v997 = vld.sshfl [vmem:[#allocation1] sm:$0xff pattern:$0x73625140]
  %s998 = scalar_lea.vmem [#allocation1], 32
  %999 = vst [vmem:[%s998] ss:$4 sm:$0xff] %v918
  %v1000 = vld.sshfl [vmem:[#allocation1 + $0x20] sm:$0xff pattern:$0x73625140]
  %1001 = vrot.lane.b32.xlu0 %v997, 48
  %v1002 = vpop.permute.xlu0 %1001
  %1003 = vrot.lane.b32.xlu0 %v1000, 48
  %v1004 = vpop.permute.xlu0 %1003
  %1009 = vst [vmem:[#allocation1] ss:$4 sm:$0xff] %v880
  %v1010 = vld.sshfl [vmem:[#allocation1] sm:$0xff pattern:$0x73625140]
  %s1011 = scalar_lea.vmem [#allocation1], 32
  %1012 = vst [vmem:[%s1011] ss:$4 sm:$0xff] %v920
  %v1013 = vld.sshfl [vmem:[#allocation1 + $0x20] sm:$0xff pattern:$0x73625140]
  %1014 = vrot.lane.b32.xlu0 %v1010, 56
  %v1015 = vpop.permute.xlu0 %1014
  %1016 = vrot.lane.b32.xlu0 %v1013, 56
  %v1017 = vpop.permute.xlu0 %1016
  %1022 = vst [vmem:[#allocation1] ss:$4 sm:$0xff] %v886
  %v1023 = vld.sshfl [vmem:[#allocation1] sm:$0xff pattern:$0x73625140]
  %s1024 = scalar_lea.vmem [#allocation1], 32
  %1025 = vst [vmem:[%s1024] ss:$4 sm:$0xff] %v926
  %v1026 = vld.sshfl [vmem:[#allocation1 + $0x20] sm:$0xff pattern:$0x73625140]
  %1027 = vrot.lane.b32.xlu0 %v1023, 64
  %v1028 = vpop.permute.xlu0 %1027
  %1029 = vrot.lane.b32.xlu0 %v1026, 64
  %v1030 = vpop.permute.xlu0 %1029
  %1035 = vst [vmem:[#allocation1] ss:$4 sm:$0xff] %v888
  %v1036 = vld.sshfl [vmem:[#allocation1] sm:$0xff pattern:$0x73625140]
  %s1037 = scalar_lea.vmem [#allocation1], 32
  %1038 = vst [vmem:[%s1037] ss:$4 sm:$0xff] %v928
  %v1039 = vld.sshfl [vmem:[#allocation1 + $0x20] sm:$0xff pattern:$0x73625140]
  %1040 = vrot.lane.b32.xlu0 %v1036, 72
  %v1041 = vpop.permute.xlu0 %1040
  %1042 = vrot.lane.b32.xlu0 %v1039, 72
  %v1043 = vpop.permute.xlu0 %1042
  %v1046 = vsel %vm822, %v854, %v937
  %v1047 = vsel %vm822, %v894, %v939
  %v1048 = vsel %vm825, %v1046, %v950
  %v1049 = vsel %vm825, %v1047, %v952
  %v1050 = vsel %vm828, %v1048, %v963
  %v1051 = vsel %vm828, %v1049, %v965
  %v1052 = vsel %vm831, %v1050, %v976
  %v1053 = vsel %vm831, %v1051, %v978
  %v1054 = vsel %vm834, %v1052, %v989
  %v1055 = vsel %vm834, %v1053, %v991
  %v1056 = vsel %vm837, %v1054, %v1002
  %v1057 = vsel %vm837, %v1055, %v1004
  %v1058 = vsel %vm840, %v1056, %v1015
  %v1059 = vsel %vm840, %v1057, %v1017
  %v1060 = vsel %vm843, %v1058, %v1028
  %v1061 = vsel %vm843, %v1059, %v1030
  %v1062 = vsel %vm846, %v1060, %v1041
  %v1063 = vsel %vm846, %v1061, %v1043
  %1066 = vrot.lane.b32.xlu0 %v1062, 80
  %v1067 = vpop.permute.xlu0 %1066
  %1068 = vrot.lane.b32.xlu0 %v1063, 80
  %v1069 = vpop.permute.xlu0 %1068
  %vm1072 = vcmask 654336
  %v1073 = vsel %vm1072, %v847, %v1067
  %v1074 = vsel %vm1072, %v848, %v1069
  %v1077 = vrot.slane %v1067, 6
  %v1078 = vrot.slane %v1069, 6
  %vm1079 = vcmask 1041408
  %v1080 = vsel %vm1079, %v1073, %v1077
  %v1081 = vsel %vm1079, %v1074, %v1078
  %v1082 = vld [vmem:[%s3] sm:$0xff]
  %v1083 = vld [vmem:[%s3 + $0x8] sm:$0xff]
  %v1084 = vld [vmem:[%s3 + $0x10] sm:$0xff]
  %v1085 = vld [vmem:[%s3 + $0x18] sm:$0xff]
  %v1086 = vld [vmem:[%s3 + $0x20] sm:$0xff]
  %v1087 = vld [vmem:[%s3 + $0x28] sm:$0xff]
  %v1088 = vld [vmem:[%s3 + $0x30] sm:$0xff]
  %v1089 = vld [vmem:[%s3 + $0x38] sm:$0xff]
  %v1090 = vld [vmem:[%s3 + $0x40] sm:$0xff]
  %v1091 = vld [vmem:[%s3 + $0x48] sm:$0xff]
  %v1092 = vld [vmem:[%s3 + $0x50] sm:$0xff]
  %v1093 = vld [vmem:[%s3 + $0x58] sm:$0xff]
  %v1094 = vld [vmem:[%s3 + $0x60] sm:$0xff]
  %v1095 = vld [vmem:[%s3 + $0x68] sm:$0xff]
  %v1096 = vld [vmem:[%s3 + $0x70] sm:$0xff]
  %v1097 = vld [vmem:[%s3 + $0x78] sm:$0xff]
  %v1098 = vld [vmem:[%s3 + $0x80] sm:$0xff]
  %v1099 = vld [vmem:[%s3 + $0x88] sm:$0xff]
  %v1100 = vld [vmem:[%s3 + $0x90] sm:$0xff]
  %v1101 = vld [vmem:[%s3 + $0x98] sm:$0xff]
  %v1102 = vld [vmem:[%s4] sm:$0x1]
  %v1104 = vperm.slane %v1102, 0
  %1106 = vst [vmem:[#allocation1] ss:$4 sm:$0xff] %v1080
  %s1107 = scalar_lea.vmem [#allocation1], 1
  %1108 = vst [vmem:[%s1107] ss:$4 sm:$0xff] %v1081
  %v1109 = vld.sshfl [vmem:[#allocation1] sm:$0xff pattern:$0x73625140]
  %v1110 = vld.sshfl [vmem:[#allocation1 + $0x8] sm:$0xff pattern:$0x73625140]
  %v1112 = vsel %vm831, %v1110, 0
  %1114 = vmatpush.msra.mxu0 %v1097
  %1115 = vmatpush.msra.mxu0 %v1096
  %1116 = vmatpush.msra.mxu0 %v1095
  %1117 = vmatpush.msra.mxu0 %v1094
  %1118 = vmatpush.msra.mxu0 %v1093
  %1119 = vmatpush.msra.mxu0 %v1092
  %1120 = vmatpush.msra.mxu0 %v1091
  %1121 = vmatpush.msra.mxu0 %v1090
  %1122 = vmatpush.msra.mxu0 %v1089
  %1123 = vmatpush.msra.mxu0 %v1088
  %1124 = vmatpush.msra.mxu0 %v1087
  %1125 = vmatpush.msra.mxu0 %v1086
  %1126 = vmatpush.msra.mxu0 %v1085
  %1127 = vmatpush.msra.mxu0 %v1084
  %1128 = vmatpush.msra.mxu0 %v1083
  %1129 = vmatpush.msra.mxu0 %v1082
  %1130 = vmatmul.f32.gmra.mxu0 %v1109
  %v1131 = vpop.f32.mrf.mxu0
  %v1132 = vadd.f32 %v1104, %v1131
  %1133 = vdwg.mxu0
  %1134 = vmatpush.msra.mxu0 0.0
  %1135 = vmatpush.msra.mxu0 0.0
  %1136 = vmatpush.msra.mxu0 0.0
  %1137 = vmatpush.msra.mxu0 0.0
  %1138 = vmatpush.msra.mxu0 0.0
  %1139 = vmatpush.msra.mxu0 0.0
  %1140 = vmatpush.msra.mxu0 0.0
  %1141 = vmatpush.msra.mxu0 0.0
  %1142 = vmatpush.msra.mxu0 0.0
  %1143 = vmatpush.msra.mxu0 0.0
  %1144 = vmatpush.msra.mxu0 0.0
  %1145 = vmatpush.msra.mxu0 0.0
  %1146 = vmatpush.msra.mxu0 %v1101
  %1147 = vmatpush.msra.mxu0 %v1100
  %1148 = vmatpush.msra.mxu0 %v1099
  %1149 = vmatpush.msra.mxu0 %v1098
  %1150 = vmatmul.f32.gmra.mxu0 %v1112
  %v1151 = vpop.f32.mrf.mxu0
  %v1152 = vadd.f32 %v1132, %v1151
  %1153 = vdwg.mxu0
  %v1154 = vmax.f32 %v1152, 0.0
  %v1156 = vrot.slane %v1154, 2
  %vm1158 = vcmask 123904
  %v1159 = vsel %vm1158, %v1154, 0.0
  %v1160 = vrot.slane %v1159, 4
  %v1161 = vadd.f32 %v1159, %v1160
  %v1162 = vrot.slane %v1161, 2
  %v1163 = vadd.f32 %v1161, %v1162
  %v1164 = vrot.slane %v1163, 1
  %v1165 = vadd.f32 %v1163, %v1164
  %v1166 = vsel %vm1158, %v1156, 0.0
  %v1167 = vrot.slane %v1166, 4
  %v1168 = vadd.f32 %v1166, %v1167
  %v1169 = vrot.slane %v1168, 2
  %v1170 = vadd.f32 %v1168, %v1169
  %v1171 = vrot.slane %v1170, 1
  %v1172 = vadd.f32 %v1170, %v1171
  %v1173 = vrcp.pop 2.0
  %v1174 = vmul.f32 2.0, %v1173
  %v1175 = vsub.f32 1.0, %v1174
  %v1176 = vmul.f32 %v1173, %v1175
  %v1177 = vadd.f32 %v1173, %v1176
  %vm1178 = vweird.f32 %v1173
  %v1179 = vsel %vm1178, %v1173, %v1177
  %v1180 = vmul.f32 %v1165, %v1179
  %v1181 = vmul.f32 %v1172, %v1179
  %v1182 = vld [vmem:[%s5] sm:$0xff]
  %v1183 = vld [vmem:[%s5 + $0x8] sm:$0xff]
  %v1184 = vld [vmem:[#allocation2] sm:$0x1]
  %v1186 = vperm.slane %v1184, 0
  %vm1190 = vcmask 1041409
  %v1191 = vsel %vm1190, %v1181, %v1180
  %v1192 = vsel %vm825, %v1191, 0
  %1194 = vmatpush.msra.mxu0 0.0
  %1195 = vmatpush.msra.mxu0 0.0
  %1196 = vmatpush.msra.mxu0 0.0
  %1197 = vmatpush.msra.mxu0 0.0
  %1198 = vmatpush.msra.mxu0 0.0
  %1199 = vmatpush.msra.mxu0 0.0
  %1200 = vmatpush.msra.mxu0 0.0
  %1201 = vmatpush.msra.mxu0 0.0
  %1202 = vmatpush.msra.mxu0 0.0
  %1203 = vmatpush.msra.mxu0 0.0
  %1204 = vmatpush.msra.mxu0 0.0
  %1205 = vmatpush.msra.mxu0 0.0
  %1206 = vmatpush.msra.mxu0 0.0
  %1207 = vmatpush.msra.mxu0 0.0
  %1208 = vmatpush.msra.mxu0 %v1183
  %1209 = vmatpush.msra.mxu0 %v1182
  %1210 = vmatmul.f32.gmra.mxu0 %v1192
  %v1211 = vpop.f32.mrf.mxu0
  %v1212 = vadd.f32 %v1186, %v1211
  %1213 = vdwg.mxu0
  %vm1214 = vcmask 1024
  %1215 = vst.msk [vmem:[%s7] sm:$0x3] %vm1214, %v1212
  // Predicated region
  $region30: #{tpu_custom_call.1} parent=0 // pred_check
    _
  $region31: #{tpu_custom_call.1} parent=0 // pred_check_branch
    %1217 = sbr.rel (0) target = $region33
  $region32: #{tpu_custom_call.1} parent=0 // pred_region
    _
  $region33: #{tpu_custom_call.1} parent=0 // pred_fallthru
    _
  // Predicated region
  $region34: #{tpu_custom_call.1} parent=0 // pred_check
    _
  $region35: #{tpu_custom_call.1} parent=0 // pred_check_branch
    %1219 = sbr.rel (0) target = $region37
  $region36: #{tpu_custom_call.1} parent=0 // pred_region
    _
  $region37: #{tpu_custom_call.1} parent=0 // pred_fallthru
    _

</llo_original>
